<compile_context>
chip_gen: v7x
topology: tpu7x:2x2x1
jax: 0.10.0
libtpu: 0.0.40
codegen_flags: <defaults>
</compile_context>

<pallas_src>
import math
import functools

import jax
import jax.numpy as jnp
from jax.experimental import pallas as pl
from jax.experimental.pallas import tpu as pltpu


def _mca_kernel(n_heads, x_ref, mask_ref, wqkv_ref, bqkv_ref, wp_ref, bp_ref,
                o_ref):
    Bb, T, C = x_ref.shape
    D = C // n_heads
    M = Bb * T

    # (Bb, T, C) -> (Bb*T, C): leading-dim merge (layout no-op), one bf16 cast.
    xb = x_ref[...].reshape(M, C).astype(jnp.bfloat16)

    # Fused QKV projection: one MXU pass, M = Bb*T, N = 3C, f32 accumulation.
    # (1/sqrt(D) is already folded into the Wq / bq columns at param-prep.)
    qkv = (jnp.dot(xb, wqkv_ref[...], preferred_element_type=jnp.float32)
           + bqkv_ref[0]).astype(jnp.bfloat16)           # single bf16 cast

    mask_add = mask_ref[...]                              # (T, T) additive mask, f32

    # Per-head attention (n_heads is small & static).  Each head's output is
    # folded straight into the output projection -> no lane concat; the only
    # value carried across iterations is the f32 (M, C) accumulator.
    acc = jnp.zeros((M, C), jnp.float32)
    for h in range(n_heads):
        qh = qkv[:, h * D:(h + 1) * D].reshape(Bb, T, D)
        kh = qkv[:, C + h * D:C + (h + 1) * D].reshape(Bb, T, D)
        vh = qkv[:, 2 * C + h * D:2 * C + (h + 1) * D].reshape(Bb, T, D)

        s = jnp.einsum('bqd,bkd->bqk', qh, kh,
                       preferred_element_type=jnp.float32)     # (Bb, T, T) f32
        s = s + mask_add[None, :, :]
        m = jnp.max(s, axis=-1, keepdims=True)
        e = jnp.exp(s - m)
        p = e * pl.reciprocal(jnp.sum(e, axis=-1, keepdims=True), approx=True)

        oh = jnp.einsum('bqk,bkd->bqd', p.astype(jnp.bfloat16), vh,
                        preferred_element_type=jnp.float32)    # (Bb, T, D)

        acc = acc + jnp.dot(oh.reshape(M, D).astype(jnp.bfloat16),
                            wp_ref[h * D:(h + 1) * D, :],
                            preferred_element_type=jnp.float32)

    out = acc + bp_ref[0]                                      # (M, C) f32

    # Lane-dense store: merge (Bb*T, C) -> (Bb, T*C) so the output block's last
    # dim is T*C (>= 128) and the store/writeback is dense instead of masked.
    out3 = out.reshape(Bb, T, C)                               # leading-dim split
    dense = jnp.concatenate([out3[:, t, :] for t in range(T)], axis=-1)
    o_ref[...] = dense.astype(o_ref.dtype)


def prepare_params(params, n_heads):
    """One-time weight fusion / casts (hoisted out of the per-call path)."""
    C = params["wq"].shape[0]
    D = C // n_heads
    scale = 1.0 / math.sqrt(D)           # folded into q weights AND q bias
    return {
        "wqkv": jnp.concatenate(
            [params["wq"] * scale, params["wk"], params["wv"]],
            axis=1).astype(jnp.bfloat16),                       # (C, 3C) bf16
        "bqkv": jnp.concatenate(
            [params["bq"] * scale, params["bk"], params["bv"]],
            axis=1).astype(jnp.float32),                        # (1, 3C) f32
        "wp": params["wp"].astype(jnp.bfloat16),                # (C, C)  bf16
        "bp": params["bp"].astype(jnp.float32),                 # (1, C)  f32
    }


def _pick_batch_block(B, T, target_rows=2048):
    """Batch elements per grid step.

    Policy: fewest, biggest steps (per-step overhead ~0.35us); 8-aligned Bb so
    the (Bb, T*C) output blocks satisfy the (8,128) rule; ~256-row MXU M when
    tiling; split a fits-in-one-block batch in two only when each half still
    gives the MXU >= 256 rows (keeps both v7x TensorCores busy).
    """
    if B * T <= target_rows:
        half = B // 2
        if half % 8 == 0 and half * T >= 256:      # implies B even
            return half                            # two steps -> 2 v7x TCs
        return B                                   # grid=(1,): optimal v5e/v6e
    align = max(8, 256 // T)                       # 8-aligned, ~256-row M
    Bb = max(align, (target_rows // T) // align * align)
    return min(Bb, B)


def masked_causal_attention(x, fused, n_heads):
    """x: (B, T, C) float32; `fused` from prepare_params(). Eval-mode (no dropout)."""
    B, T, C = x.shape
    assert C % n_heads == 0

    Bb = _pick_batch_block(B, T)
    n_blocks = -(-B // Bb)
    B_pad = n_blocks * Bb
    if B_pad != B:                      # pad batch (padded rows sliced off below)
        x = jnp.concatenate([x, jnp.zeros((B_pad - B, T, C), x.dtype)], axis=0)

    # Additive causal mask (0 on/below diagonal, -1e30 above), passed as input.
    idx = jnp.arange(T, dtype=jnp.int32)
    mask_add = jnp.where(idx[:, None] >= idx[None, :], 0.0, -1e30).astype(jnp.float32)

    const2d = lambda shape: pl.BlockSpec(shape, lambda i: (0, 0))

    out = pl.pallas_call(
        functools.partial(_mca_kernel, n_heads),
        out_shape=jax.ShapeDtypeStruct((B_pad, T * C), x.dtype),  # lane-dense slab
        grid=(n_blocks,),
        in_specs=[
            pl.BlockSpec((Bb, T, C), lambda i: (i, 0, 0)),   # x (batch-tiled)
            const2d((T, T)),                                 # additive causal mask
            const2d((C, 3 * C)),                             # fused Wqkv (bf16)
            const2d((1, 3 * C)),                             # fused bqkv (f32)
            const2d((C, C)),                                 # Wp (bf16)
            const2d((1, C)),                                 # bp (f32)
        ],
        out_specs=pl.BlockSpec((Bb, T * C), lambda i: (i, 0)),
        compiler_params=pltpu.CompilerParams(
            dimension_semantics=("parallel",),   # batch axis -> both v7x TCs
            # Explicit budget: v5e's scoped default is only 16 MiB; 32 MiB also
            # leaves pipelining headroom inside v7x's 64 MiB physical VMEM.
            vmem_limit_bytes=32 * 1024 * 1024,
        ),
    )(x, mask_add, fused["wqkv"], fused["bqkv"], fused["wp"], fused["bp"])

    return out.reshape(B_pad, T, C)[:B]


def attention_ref(x, params, n_heads):
    """Pure-JAX f32 reference of the PyTorch MaskedCausalAttention (eval)."""
    B, T, C = x.shape
    D = C // n_heads
    q = x @ params["wq"] + params["bq"][0]
    k = x @ params["wk"] + params["bk"][0]
    v = x @ params["wv"] + params["bv"][0]
    q = q.reshape(B, T, n_heads, D).transpose(0, 2, 1, 3)
    k = k.reshape(B, T, n_heads, D).transpose(0, 2, 1, 3)
    v = v.reshape(B, T, n_heads, D).transpose(0, 2, 1, 3)
    w = (q @ k.transpose(0, 1, 3, 2)) / math.sqrt(D)
    mask = jnp.tril(jnp.ones((T, T), bool))
    w = jnp.where(mask[None, None], w, -jnp.inf)
    p = jax.nn.softmax(w, axis=-1)
    a = (p @ v).transpose(0, 2, 1, 3).reshape(B, T, C)
    return a @ params["wp"] + params["bp"][0]


def init_params(key, h_dim):
    ks = jax.random.split(key, 8)
    s = 1.0 / math.sqrt(h_dim)
    return {
        "wq": jax.random.uniform(ks[0], (h_dim, h_dim), jnp.float32, -s, s),
        "bq": jax.random.uniform(ks[1], (1, h_dim), jnp.float32, -s, s),
        "wk": jax.random.uniform(ks[2], (h_dim, h_dim), jnp.float32, -s, s),
        "bk": jax.random.uniform(ks[3], (1, h_dim), jnp.float32, -s, s),
        "wv": jax.random.uniform(ks[4], (h_dim, h_dim), jnp.float32, -s, s),
        "bv": jax.random.uniform(ks[5], (1, h_dim), jnp.float32, -s, s),
        "wp": jax.random.uniform(ks[6], (h_dim, h_dim), jnp.float32, -s, s),
        "bp": jax.random.uniform(ks[7], (1, h_dim), jnp.float32, -s, s),
    }


if __name__ == "__main__":
    B, T, h_dim, n_heads = 2, 8, 32, 2   # max_T = T = 8
    key = jax.random.PRNGKey(0)
    kx, kp = jax.random.split(key)
    x = jax.random.normal(kx, (B, T, h_dim), jnp.float32)
    params = init_params(kp, h_dim)
    fused = prepare_params(params, n_heads)      # one-time weight fusion (hoisted)

    out = masked_causal_attention(x, fused, n_heads)
    out = jax.block_until_ready(out)

    ref = attention_ref(x, params, n_heads)
    assert out.shape == (B, T, h_dim)
    err = float(jnp.max(jnp.abs(out - ref)))
    # bf16 MXU operands + approx reciprocal -> compare at bf16-level tolerance
    assert jnp.allclose(out, ref, atol=3e-2, rtol=3e-2), f"max err {err}"
    print("KERNEL_OK")
</pallas_src>

<mosaic_0001>
module attributes {stable_mosaic.version = 11 : i64} {
  func.func @_mca_kernel(%arg0: i32, %arg1: memref<2x8x32xf32, #tpu.memory_space<vmem>>, %arg2: memref<8x8xf32, #tpu.memory_space<vmem>>, %arg3: memref<32x96xbf16, #tpu.memory_space<vmem>>, %arg4: memref<1x96xf32, #tpu.memory_space<vmem>>, %arg5: memref<32x32xbf16, #tpu.memory_space<vmem>>, %arg6: memref<1x32xf32, #tpu.memory_space<vmem>>, %arg7: memref<2x256xf32, #tpu.memory_space<vmem>>) attributes {dimension_semantics = [#tpu.dimension_semantics<parallel>], iteration_bounds = array<i64: 1>, scalar_prefetch = 0 : i64, scratch_operands = 0 : i64, tpu.core_type = #tpu.core_type<tc>, window_params = [{transform_indices = @transform_0, window_bounds = array<i64: 2, 8, 32>}, {pipeline_mode = #tpu.pipeline_mode<synchronous>, transform_indices = @transform_1, window_bounds = array<i64: 8, 8>}, {pipeline_mode = #tpu.pipeline_mode<synchronous>, transform_indices = @transform_2, window_bounds = array<i64: 32, 96>}, {pipeline_mode = #tpu.pipeline_mode<synchronous>, transform_indices = @transform_3, window_bounds = array<i64: 1, 96>}, {pipeline_mode = #tpu.pipeline_mode<synchronous>, transform_indices = @transform_4, window_bounds = array<i64: 32, 32>}, {pipeline_mode = #tpu.pipeline_mode<synchronous>, transform_indices = @transform_5, window_bounds = array<i64: 1, 32>}, {transform_indices = @transform_6, window_bounds = array<i64: 2, 256>}]} {
    %c0 = arith.constant 0 : index
    %c0_0 = arith.constant 0 : index
    %c0_1 = arith.constant 0 : index
    %0 = vector.load %arg1[%c0, %c0_0, %c0_1] : memref<2x8x32xf32, #tpu.memory_space<vmem>>, vector<2x8x32xf32>
    %1 = vector.shape_cast %0 : vector<2x8x32xf32> to vector<16x32xf32>
    %2 = arith.truncf %1 : vector<16x32xf32> to vector<16x32xbf16>
    %c0_2 = arith.constant 0 : index
    %c0_3 = arith.constant 0 : index
    %3 = vector.load %arg3[%c0_2, %c0_3] : memref<32x96xbf16, #tpu.memory_space<vmem>>, vector<32x96xbf16>
    %cst = arith.constant dense<0.000000e+00> : vector<16x96xf32>
    %4 = tpu.matmul %2, %3, %cst {dimension_numbers = #tpu.dot_dimension_numbers<[1], [0], [0], [1], [0, 0, 1, 1], [], []>} : vector<16x32xbf16>, vector<32x96xbf16>, vector<16x96xf32> -> vector<16x96xf32>
    %c0_4 = arith.constant 0 : index
    %c0_5 = arith.constant 0 : index
    %5 = vector.load %arg4[%c0_4, %c0_5] : memref<1x96xf32, #tpu.memory_space<vmem>>, vector<1x96xf32>
    %6 = vector.shape_cast %5 : vector<1x96xf32> to vector<96xf32>
    %7 = vector.shape_cast %6 : vector<96xf32> to vector<1x96xf32>
    %8 = vector.broadcast %7 : vector<1x96xf32> to vector<16x96xf32>
    %9 = arith.addf %4, %8 : vector<16x96xf32>
    %10 = arith.truncf %9 : vector<16x96xf32> to vector<16x96xbf16>
    %c0_6 = arith.constant 0 : index
    %c0_7 = arith.constant 0 : index
    %11 = vector.load %arg2[%c0_6, %c0_7] : memref<8x8xf32, #tpu.memory_space<vmem>>, vector<8x8xf32>
    %cst_8 = arith.constant 0.000000e+00 : f32
    %12 = vector.broadcast %cst_8 : f32 to vector<16x32xf32>
    %13 = vector.extract_strided_slice %10 {offsets = [0, 0], sizes = [16, 16], strides = [1, 1]} : vector<16x96xbf16> to vector<16x16xbf16>
    %14 = vector.shape_cast %13 : vector<16x16xbf16> to vector<2x8x16xbf16>
    %15 = vector.extract_strided_slice %10 {offsets = [0, 32], sizes = [16, 16], strides = [1, 1]} : vector<16x96xbf16> to vector<16x16xbf16>
    %16 = vector.shape_cast %15 : vector<16x16xbf16> to vector<2x8x16xbf16>
    %17 = vector.extract_strided_slice %10 {offsets = [0, 64], sizes = [16, 16], strides = [1, 1]} : vector<16x96xbf16> to vector<16x16xbf16>
    %18 = vector.shape_cast %17 : vector<16x16xbf16> to vector<2x8x16xbf16>
    "tpu.trace_start"() <{level = 10 : i32, message = "bqd,bkd->bqk"}> : () -> ()
    %cst_9 = arith.constant dense<0.000000e+00> : vector<2x8x8xf32>
    %19 = tpu.matmul %14, %16, %cst_9 {dimension_numbers = #tpu.dot_dimension_numbers<[2], [2], [1], [1], [0, 0, 0, 1, 1, 1], [0], [0]>} : vector<2x8x16xbf16>, vector<2x8x16xbf16>, vector<2x8x8xf32> -> vector<2x8x8xf32>
    "tpu.trace_stop"() : () -> ()
    %20 = vector.shape_cast %11 : vector<8x8xf32> to vector<1x8x8xf32>
    %21 = vector.broadcast %20 : vector<1x8x8xf32> to vector<2x8x8xf32>
    %22 = arith.addf %19, %21 : vector<2x8x8xf32>
    %cst_10 = arith.constant dense<0xFF800000> : vector<2x8xf32>
    %23 = vector.multi_reduction <maximumf>, %22, %cst_10 [2] : vector<2x8x8xf32> to vector<2x8xf32>
    %24 = vector.shape_cast %23 : vector<2x8xf32> to vector<2x8x1xf32>
    %25 = vector.broadcast %24 : vector<2x8x1xf32> to vector<2x8x8xf32>
    %26 = arith.subf %22, %25 : vector<2x8x8xf32>
    %27 = math.exp %26 : vector<2x8x8xf32>
    %cst_11 = arith.constant dense<0.000000e+00> : vector<2x8xf32>
    %28 = vector.multi_reduction <add>, %27, %cst_11 [2] : vector<2x8x8xf32> to vector<2x8xf32>
    %29 = vector.shape_cast %28 : vector<2x8xf32> to vector<2x8x1xf32>
    %30 = tpu.reciprocal %29 {approx = true} : vector<2x8x1xf32> -> vector<2x8x1xf32>
    %31 = vector.broadcast %30 : vector<2x8x1xf32> to vector<2x8x8xf32>
    %32 = arith.mulf %27, %31 : vector<2x8x8xf32>
    %33 = arith.truncf %32 : vector<2x8x8xf32> to vector<2x8x8xbf16>
    "tpu.trace_start"() <{level = 10 : i32, message = "bqk,bkd->bqd"}> : () -> ()
    %cst_12 = arith.constant dense<0.000000e+00> : vector<2x8x16xf32>
    %34 = tpu.matmul %33, %18, %cst_12 {dimension_numbers = #tpu.dot_dimension_numbers<[2], [1], [1], [2], [0, 0, 0, 1, 1, 2], [0], [0]>} : vector<2x8x8xbf16>, vector<2x8x16xbf16>, vector<2x8x16xf32> -> vector<2x8x16xf32>
    "tpu.trace_stop"() : () -> ()
    %35 = vector.shape_cast %34 : vector<2x8x16xf32> to vector<16x16xf32>
    %36 = arith.truncf %35 : vector<16x16xf32> to vector<16x16xbf16>
    %c0_13 = arith.constant 0 : index
    %c0_14 = arith.constant 0 : index
    %37 = vector.load %arg5[%c0_13, %c0_14] : memref<32x32xbf16, #tpu.memory_space<vmem>>, vector<16x32xbf16>
    %cst_15 = arith.constant dense<0.000000e+00> : vector<16x32xf32>
    %38 = tpu.matmul %36, %37, %cst_15 {dimension_numbers = #tpu.dot_dimension_numbers<[1], [0], [0], [1], [0, 0, 1, 1], [], []>} : vector<16x16xbf16>, vector<16x32xbf16>, vector<16x32xf32> -> vector<16x32xf32>
    %39 = arith.addf %12, %38 : vector<16x32xf32>
    %40 = vector.extract_strided_slice %10 {offsets = [0, 16], sizes = [16, 16], strides = [1, 1]} : vector<16x96xbf16> to vector<16x16xbf16>
    %41 = vector.shape_cast %40 : vector<16x16xbf16> to vector<2x8x16xbf16>
    %42 = vector.extract_strided_slice %10 {offsets = [0, 48], sizes = [16, 16], strides = [1, 1]} : vector<16x96xbf16> to vector<16x16xbf16>
    %43 = vector.shape_cast %42 : vector<16x16xbf16> to vector<2x8x16xbf16>
    %44 = vector.extract_strided_slice %10 {offsets = [0, 80], sizes = [16, 16], strides = [1, 1]} : vector<16x96xbf16> to vector<16x16xbf16>
    %45 = vector.shape_cast %44 : vector<16x16xbf16> to vector<2x8x16xbf16>
    "tpu.trace_start"() <{level = 10 : i32, message = "bqd,bkd->bqk"}> : () -> ()
    %cst_16 = arith.constant dense<0.000000e+00> : vector<2x8x8xf32>
    %46 = tpu.matmul %41, %43, %cst_16 {dimension_numbers = #tpu.dot_dimension_numbers<[2], [2], [1], [1], [0, 0, 0, 1, 1, 1], [0], [0]>} : vector<2x8x16xbf16>, vector<2x8x16xbf16>, vector<2x8x8xf32> -> vector<2x8x8xf32>
    "tpu.trace_stop"() : () -> ()
    %47 = vector.shape_cast %11 : vector<8x8xf32> to vector<1x8x8xf32>
    %48 = vector.broadcast %47 : vector<1x8x8xf32> to vector<2x8x8xf32>
    %49 = arith.addf %46, %48 : vector<2x8x8xf32>
    %cst_17 = arith.constant dense<0xFF800000> : vector<2x8xf32>
    %50 = vector.multi_reduction <maximumf>, %49, %cst_17 [2] : vector<2x8x8xf32> to vector<2x8xf32>
    %51 = vector.shape_cast %50 : vector<2x8xf32> to vector<2x8x1xf32>
    %52 = vector.broadcast %51 : vector<2x8x1xf32> to vector<2x8x8xf32>
    %53 = arith.subf %49, %52 : vector<2x8x8xf32>
    %54 = math.exp %53 : vector<2x8x8xf32>
    %cst_18 = arith.constant dense<0.000000e+00> : vector<2x8xf32>
    %55 = vector.multi_reduction <add>, %54, %cst_18 [2] : vector<2x8x8xf32> to vector<2x8xf32>
    %56 = vector.shape_cast %55 : vector<2x8xf32> to vector<2x8x1xf32>
    %57 = tpu.reciprocal %56 {approx = true} : vector<2x8x1xf32> -> vector<2x8x1xf32>
    %58 = vector.broadcast %57 : vector<2x8x1xf32> to vector<2x8x8xf32>
    %59 = arith.mulf %54, %58 : vector<2x8x8xf32>
    %60 = arith.truncf %59 : vector<2x8x8xf32> to vector<2x8x8xbf16>
    "tpu.trace_start"() <{level = 10 : i32, message = "bqk,bkd->bqd"}> : () -> ()
    %cst_19 = arith.constant dense<0.000000e+00> : vector<2x8x16xf32>
    %61 = tpu.matmul %60, %45, %cst_19 {dimension_numbers = #tpu.dot_dimension_numbers<[2], [1], [1], [2], [0, 0, 0, 1, 1, 2], [0], [0]>} : vector<2x8x8xbf16>, vector<2x8x16xbf16>, vector<2x8x16xf32> -> vector<2x8x16xf32>
    "tpu.trace_stop"() : () -> ()
    %62 = vector.shape_cast %61 : vector<2x8x16xf32> to vector<16x16xf32>
    %63 = arith.truncf %62 : vector<16x16xf32> to vector<16x16xbf16>
    %c16 = arith.constant 16 : index
    %c0_20 = arith.constant 0 : index
    %64 = vector.load %arg5[%c16, %c0_20] : memref<32x32xbf16, #tpu.memory_space<vmem>>, vector<16x32xbf16>
    %cst_21 = arith.constant dense<0.000000e+00> : vector<16x32xf32>
    %65 = tpu.matmul %63, %64, %cst_21 {dimension_numbers = #tpu.dot_dimension_numbers<[1], [0], [0], [1], [0, 0, 1, 1], [], []>} : vector<16x16xbf16>, vector<16x32xbf16>, vector<16x32xf32> -> vector<16x32xf32>
    %66 = arith.addf %39, %65 : vector<16x32xf32>
    %c0_22 = arith.constant 0 : index
    %c0_23 = arith.constant 0 : index
    %67 = vector.load %arg6[%c0_22, %c0_23] : memref<1x32xf32, #tpu.memory_space<vmem>>, vector<1x32xf32>
    %68 = vector.shape_cast %67 : vector<1x32xf32> to vector<32xf32>
    %69 = vector.shape_cast %68 : vector<32xf32> to vector<1x32xf32>
    %70 = vector.broadcast %69 : vector<1x32xf32> to vector<16x32xf32>
    %71 = arith.addf %66, %70 : vector<16x32xf32>
    %72 = vector.shape_cast %71 : vector<16x32xf32> to vector<2x8x32xf32>
    %73 = vector.extract_strided_slice %72 {offsets = [0, 0, 0], sizes = [2, 1, 32], strides = [1, 1, 1]} : vector<2x8x32xf32> to vector<2x1x32xf32>
    %74 = vector.shape_cast %73 : vector<2x1x32xf32> to vector<2x32xf32>
    %75 = vector.extract_strided_slice %72 {offsets = [0, 1, 0], sizes = [2, 1, 32], strides = [1, 1, 1]} : vector<2x8x32xf32> to vector<2x1x32xf32>
    %76 = vector.shape_cast %75 : vector<2x1x32xf32> to vector<2x32xf32>
    %77 = vector.extract_strided_slice %72 {offsets = [0, 2, 0], sizes = [2, 1, 32], strides = [1, 1, 1]} : vector<2x8x32xf32> to vector<2x1x32xf32>
    %78 = vector.shape_cast %77 : vector<2x1x32xf32> to vector<2x32xf32>
    %79 = vector.extract_strided_slice %72 {offsets = [0, 3, 0], sizes = [2, 1, 32], strides = [1, 1, 1]} : vector<2x8x32xf32> to vector<2x1x32xf32>
    %80 = vector.shape_cast %79 : vector<2x1x32xf32> to vector<2x32xf32>
    %81 = vector.extract_strided_slice %72 {offsets = [0, 4, 0], sizes = [2, 1, 32], strides = [1, 1, 1]} : vector<2x8x32xf32> to vector<2x1x32xf32>
    %82 = vector.shape_cast %81 : vector<2x1x32xf32> to vector<2x32xf32>
    %83 = vector.extract_strided_slice %72 {offsets = [0, 5, 0], sizes = [2, 1, 32], strides = [1, 1, 1]} : vector<2x8x32xf32> to vector<2x1x32xf32>
    %84 = vector.shape_cast %83 : vector<2x1x32xf32> to vector<2x32xf32>
    %85 = vector.extract_strided_slice %72 {offsets = [0, 6, 0], sizes = [2, 1, 32], strides = [1, 1, 1]} : vector<2x8x32xf32> to vector<2x1x32xf32>
    %86 = vector.shape_cast %85 : vector<2x1x32xf32> to vector<2x32xf32>
    %87 = vector.extract_strided_slice %72 {offsets = [0, 7, 0], sizes = [2, 1, 32], strides = [1, 1, 1]} : vector<2x8x32xf32> to vector<2x1x32xf32>
    %88 = vector.shape_cast %87 : vector<2x1x32xf32> to vector<2x32xf32>
    %89 = tpu.concatenate %74, %76, %78, %80, %82, %84, %86, %88 in 1 : vector<2x32xf32>, vector<2x32xf32>, vector<2x32xf32>, vector<2x32xf32>, vector<2x32xf32>, vector<2x32xf32>, vector<2x32xf32>, vector<2x32xf32> -> vector<2x256xf32>
    %c0_24 = arith.constant 0 : index
    %c0_25 = arith.constant 0 : index
    %90 = vector.load %arg7[%c0_24, %c0_25] : memref<2x256xf32, #tpu.memory_space<vmem>>, vector<2x256xf32>
    tpu.vector_store %arg7[%c0_24, %c0_25], %89 {strides = array<i32>} : memref<2x256xf32, #tpu.memory_space<vmem>>, vector<2x256xf32>,
    return
  }
  func.func @transform_0(%arg0: i32) -> (i32, i32, i32) {
    %c0_i32 = arith.constant 0 : i32
    %c0_i32_0 = arith.constant 0 : i32
    %c0_i32_1 = arith.constant 0 : i32
    return %arg0, %c0_i32, %c0_i32_0 : i32, i32, i32
  }
  func.func @transform_1(%arg0: i32) -> (i32, i32) {
    %c0_i32 = arith.constant 0 : i32
    %c0_i32_0 = arith.constant 0 : i32
    %c0_i32_1 = arith.constant 0 : i32
    return %c0_i32, %c0_i32_0 : i32, i32
  }
  func.func @transform_2(%arg0: i32) -> (i32, i32) {
    %c0_i32 = arith.constant 0 : i32
    %c0_i32_0 = arith.constant 0 : i32
    %c0_i32_1 = arith.constant 0 : i32
    return %c0_i32, %c0_i32_0 : i32, i32
  }
  func.func @transform_3(%arg0: i32) -> (i32, i32) {
    %c0_i32 = arith.constant 0 : i32
    %c0_i32_0 = arith.constant 0 : i32
    %c0_i32_1 = arith.constant 0 : i32
    return %c0_i32, %c0_i32_0 : i32, i32
  }
  func.func @transform_4(%arg0: i32) -> (i32, i32) {
    %c0_i32 = arith.constant 0 : i32
    %c0_i32_0 = arith.constant 0 : i32
    %c0_i32_1 = arith.constant 0 : i32
    return %c0_i32, %c0_i32_0 : i32, i32
  }
  func.func @transform_5(%arg0: i32) -> (i32, i32) {
    %c0_i32 = arith.constant 0 : i32
    %c0_i32_0 = arith.constant 0 : i32
    %c0_i32_1 = arith.constant 0 : i32
    return %c0_i32, %c0_i32_0 : i32, i32
  }
  func.func @transform_6(%arg0: i32) -> (i32, i32) {
    %c0_i32 = arith.constant 0 : i32
    %c0_i32_0 = arith.constant 0 : i32
    return %arg0, %c0_i32 : i32, i32
  }
}

</mosaic_0001>

<llo_original>
// kernel: tpu_custom_call.1
$region0: #{tpu_custom_call.1}
  #allocation0 [shape = 'u32[]', space=smem, size = 0x4, offset = 0x4, fixed_abs, tag = 'smem constant byte address 0x4 - core index']
  #allocation1 [shape = 'u32[144,128]{1,0:T(1,128)}', space=vmem, size = 0x12000, scoped, tag = 'internal scratch']
  %s0 = inlined_call_operand.hbm [shape: f32[2,8,32], index: 0, kind: input, shape index: {}]
  %s1 = inlined_call_operand.hbm [shape: f32[8,8], index: 1, kind: input, shape index: {}]
  %s2 = inlined_call_operand.hbm [shape: bf16[32,96], index: 2, kind: input, shape index: {}]
  %s3 = inlined_call_operand.vmem [shape: f32[1,96], index: 3, kind: input, shape index: {}]
  %s4 = inlined_call_operand.hbm [shape: bf16[32,32], index: 4, kind: input, shape index: {}]
  %s5 = inlined_call_operand.vmem [shape: f32[1,32], index: 5, kind: input, shape index: {}]
  %s6 = inlined_call_operand.hbm [shape: f32[2,256], index: 6, kind: output, shape index: {}]
  %s7 = sld [smem:[#allocation0]]
  $region50: #{tpu_custom_call.1} parent=0
    _
  %s9 = ssub.s32 1, %s7
  %s10 = scalar_select 0, %s9, %s7
  $region1: #{tpu_custom_call.1} parent=0
    #allocation2 [shape = 'u8[8192]{0}', space=vmem, size = 0x2000, scoped, tag = 'input window, operand 0, single buffered']
    #allocation3 [shape = 's32[1]{0}', space=sflag, size = 0x4, scoped, tag = 'scoped memory for tpu_custom_call.1']
    #allocation4 [shape = 's32[1]{0}', space=sflag, size = 0x4, scoped, tag = 'scoped memory for tpu_custom_call.1']
    #allocation5 [shape = 'u8[4096]{0}', space=vmem, size = 0x1000, scoped, tag = 'input window, operand 1, single buffered']
    #allocation6 [shape = 's32[1]{0}', space=sflag, size = 0x4, scoped, tag = 'scoped memory for tpu_custom_call.1']
    #allocation7 [shape = 'u8[8192]{0}', space=vmem, size = 0x2000, scoped, tag = 'input window, operand 2, single buffered']
    #allocation8 [shape = 'u8[8192]{0}', space=vmem, size = 0x2000, scoped, tag = 'input window, operand 4, single buffered']
    #allocation9 [shape = 's32[1]{0}', space=sflag, size = 0x4, scoped, tag = 'scoped memory for tpu_custom_call.1']
    #allocation10 [shape = 'u8[2048]{0}', space=vmem, size = 0x800, scoped, tag = 'output window, operand 0, single buffered']
    %11 = vsyncpa [#allocation3], 0
    %12 = vsyncpa [#allocation6], 0
    %13 = vsyncpa [#allocation9], 0
    %14 = vsyncpa [#allocation4], 0
    // Predicated region
    $region2: #{tpu_custom_call.1} parent=1 // pred_check
      _
    $region3: #{tpu_custom_call.1} parent=1 // pred_check_branch
      %16 = sbr.rel (0) target = $region5
    $region4: #{tpu_custom_call.1} parent=1 // pred_region
      %s18 = ssub.s32 256, 256
      %19 = vsyncadd [#allocation3], %s18
      %s20 = sshll.u32 [#allocation2], 4
      %s21 = int_to_ptr.vmem [resolvable:$true] %s20
      %26 = dma.hbm_to_vmem [thread:$0]  %s0, 256, %s21, [#allocation3], 128, 128, 8
    $region5: #{tpu_custom_call.1} parent=1 // pred_fallthru
      _
    // Predicated region
    $region6: #{tpu_custom_call.1} parent=1 // pred_check
      _
    $region7: #{tpu_custom_call.1} parent=1 // pred_check_branch
      %28 = sbr.rel (0) target = $region9
    $region8: #{tpu_custom_call.1} parent=1 // pred_region
      %s30 = ssub.s32 128, 128
      %31 = vsyncadd [#allocation6], %s30
      %s33 = sshll.u32 [#allocation5], 4
      %s34 = int_to_ptr.vmem [resolvable:$true] %s33
      %36 = dma.hbm_to_vmem [thread:$0]  %s1, 128, %s34, [#allocation6]
    $region9: #{tpu_custom_call.1} parent=1 // pred_fallthru
      _
    // Predicated region
    $region10: #{tpu_custom_call.1} parent=1 // pred_check
      _
    $region11: #{tpu_custom_call.1} parent=1 // pred_check_branch
      %38 = sbr.rel (0) target = $region13
    $region12: #{tpu_custom_call.1} parent=1 // pred_region
      %s40 = ssub.s32 256, 256
      %41 = vsyncadd [#allocation6], %s40
      %s42 = sshll.u32 [#allocation7], 4
      %s43 = int_to_ptr.vmem [resolvable:$true] %s42
      %48 = dma.hbm_to_vmem [thread:$0]  %s2, 256, %s43, [#allocation6], 64, 64, 4
    $region13: #{tpu_custom_call.1} parent=1 // pred_fallthru
      _
    // Predicated region
    $region14: #{tpu_custom_call.1} parent=1 // pred_check
      _
    $region15: #{tpu_custom_call.1} parent=1 // pred_check_branch
      %50 = sbr.rel (0) target = $region17
    $region16: #{tpu_custom_call.1} parent=1 // pred_region
      _
    $region17: #{tpu_custom_call.1} parent=1 // pred_fallthru
      _
    // Predicated region
    $region18: #{tpu_custom_call.1} parent=1 // pred_check
      _
    $region19: #{tpu_custom_call.1} parent=1 // pred_check_branch
      %52 = sbr.rel (0) target = $region21
    $region20: #{tpu_custom_call.1} parent=1 // pred_region
      %s54 = ssub.s32 256, 256
      %55 = vsyncadd [#allocation9], %s54
      %s56 = sshll.u32 [#allocation8], 4
      %s57 = int_to_ptr.vmem [resolvable:$true] %s56
      %62 = dma.hbm_to_vmem [thread:$0]  %s4, 256, %s57, [#allocation9], 64, 64, 4
    $region21: #{tpu_custom_call.1} parent=1 // pred_fallthru
      _
    // Predicated region
    $region22: #{tpu_custom_call.1} parent=1 // pred_check
      _
    $region23: #{tpu_custom_call.1} parent=1 // pred_check_branch
      %64 = sbr.rel (0) target = $region25
    $region24: #{tpu_custom_call.1} parent=1 // pred_region
      _
    $region25: #{tpu_custom_call.1} parent=1 // pred_fallthru
      _
    // Predicated region
    $region26: #{tpu_custom_call.1} parent=1 // pred_check
      _
    $region27: #{tpu_custom_call.1} parent=1 // pred_check_branch
      %66 = sbr.rel (0) target = $region29
    $region28: #{tpu_custom_call.1} parent=1 // pred_region
      %67 = dma.done [#allocation3], 256
    $region29: #{tpu_custom_call.1} parent=1 // pred_fallthru
      _
    // Predicated region
    $region30: #{tpu_custom_call.1} parent=1 // pred_check
      _
    $region31: #{tpu_custom_call.1} parent=1 // pred_check_branch
      %69 = sbr.rel (0) target = $region33
    $region32: #{tpu_custom_call.1} parent=1 // pred_region
      %70 = dma.done [#allocation6], 128
    $region33: #{tpu_custom_call.1} parent=1 // pred_fallthru
      _
    // Predicated region
    $region34: #{tpu_custom_call.1} parent=1 // pred_check
      _
    $region35: #{tpu_custom_call.1} parent=1 // pred_check_branch
      %72 = sbr.rel (0) target = $region37
    $region36: #{tpu_custom_call.1} parent=1 // pred_region
      %73 = dma.done [#allocation6], 256
    $region37: #{tpu_custom_call.1} parent=1 // pred_fallthru
      _
    // Predicated region
    $region38: #{tpu_custom_call.1} parent=1 // pred_check
      _
    $region39: #{tpu_custom_call.1} parent=1 // pred_check_branch
      %75 = sbr.rel (0) target = $region41
    $region40: #{tpu_custom_call.1} parent=1 // pred_region
      %76 = dma.done [#allocation9], 256
    $region41: #{tpu_custom_call.1} parent=1 // pred_fallthru
      _
    %v78 = vld [vmem:[#allocation2] sm:$0xff]
    %v79 = vld [vmem:[#allocation2 + $0x8] sm:$0xff]
    %v80 = vpack.c.bf16 %v79, %v78
    %v81 = vld [vmem:[#allocation7] sm:$0xf]
    %v82 = vld [vmem:[#allocation7 + $0x4] sm:$0xf]
    %v83 = vld [vmem:[#allocation7 + $0x8] sm:$0xf]
    %v84 = vld [vmem:[#allocation7 + $0xc] sm:$0xf]
    %v85 = vld [vmem:[%s3] sm:$0x1]
    %v87 = vlaneseq
    %v88 = vshrl.u32 %v87, 7
    %v89 = vsub.s32 0, %v88
    %v90 = vrot.slane %v85, %v89
    %v96 = vunpack.c.l.b16 %v81
    %v97 = vunpack.c.l.b16 %v82
    %v98 = vunpack.c.l.b16 %v83
    %v99 = vunpack.c.l.b16 %v84
    %v100 = vpack.c.b16 %v97, %v96
    %v101 = vpack.c.b16 %v99, %v98
    %vm104 = vcmask 261120
    %v106 = vsel %vm104, %v80, 0
    %108 = vmatprep.subr.bf16.mxu0 0
    %109 = vmatpush1.bf16.msra.mxu0 %v100
    %110 = vmatprep.subr.bf16.mxu0 0
    %111 = vmatpush1.bf16.msra.mxu0 %v101
    %112 = vmatprep.subr.bf16.mxu0 0
    %113 = vmatpush1.bf16.msra.mxu0 0
    %114 = vmatprep.subr.bf16.mxu0 0
    %115 = vmatpush1.bf16.msra.mxu0 0
    %116 = vmatprep.subr.bf16.mxu0 0
    %117 = vmatpush1.bf16.msra.mxu0 0
    %118 = vmatprep.subr.bf16.mxu0 0
    %119 = vmatpush1.bf16.msra.mxu0 0
    %120 = vmatprep.subr.bf16.mxu0 0
    %121 = vmatpush1.bf16.msra.mxu0 0
    %122 = vmatprep.subr.bf16.mxu0 0
    %123 = vmatpush1.bf16.msra.mxu0 0
    %124 = vmatprep.subr.bf16.mxu0 0
    %125 = vmatpush1.bf16.msra.mxu0 0
    %126 = vmatprep.subr.bf16.mxu0 0
    %127 = vmatpush1.bf16.msra.mxu0 0
    %128 = vmatprep.subr.bf16.mxu0 0
    %129 = vmatpush1.bf16.msra.mxu0 0
    %130 = vmatprep.subr.bf16.mxu0 0
    %131 = vmatpush1.bf16.msra.mxu0 0
    %132 = vmatprep.subr.bf16.mxu0 0
    %133 = vmatpush1.bf16.msra.mxu0 0
    %134 = vmatprep.subr.bf16.mxu0 0
    %135 = vmatpush1.bf16.msra.mxu0 0
    %136 = vmatprep.subr.bf16.mxu0 0
    %137 = vmatpush1.bf16.msra.mxu0 0
    %138 = vmatprep.subr.bf16.mxu0 0
    %139 = vmatpush1.bf16.msra.mxu0 0
    %140 = vmatprep.mubr.bf16.mxu0 0
    %141 = vmatmul.mubr.bf16.gmra.mrb[0].mxu0 %v106
    %v142 = vpop.f32.mrb[0].mxu0
    %v143 = vadd.f32 %v90, %v142
    %v144 = vpop.f32.mrb[0].mxu0
    %v145 = vpop.f32.mrb[0].mxu0
    %v146 = vadd.f32 %v90, %v145
    %v147 = vpop.f32.mrb[0].mxu0
    %148 = vdwg.mxu0
    %v149 = vpack.c.bf16 %v146, %v143
    %v150 = vld [vmem:[#allocation5] sm:$0xff]
    %v152 = vunpack.c.l.b16 %v149
    %v153 = vunpack.c.h.b16 %v149
    %v154 = vpack.c.b16 %v152, %v152
    %v155 = vpack.c.b16 %v153, %v153
    %156 = vrot.lane.b32.xlu0 %v154, 96
    %v157 = vpop.permute.xlu0 %156
    %vm158 = vcmask 130048
    %v160 = vsel %vm158, %v154, 0
    %v163 = vsel %vm158, %v157, 0
    %165 = vmatprep.subr.bf16.mxu0 0
    %166 = vmatpush1.bf16.xpose.msra.mxu0 %v163
    %167 = vmatprep.subr.bf16.mxu0 0
    %168 = vmatpush1.bf16.xpose.msra.mxu0 0
    %169 = vmatprep.subr.bf16.mxu0 0
    %170 = vmatpush1.bf16.xpose.msra.mxu0 0
    %171 = vmatprep.subr.bf16.mxu0 0
    %172 = vmatpush1.bf16.xpose.msra.mxu0 0
    %173 = vmatprep.subr.bf16.mxu0 0
    %174 = vmatpush1.bf16.xpose.msra.mxu0 0
    %175 = vmatprep.subr.bf16.mxu0 0
    %176 = vmatpush1.bf16.xpose.msra.mxu0 0
    %177 = vmatprep.subr.bf16.mxu0 0
    %178 = vmatpush1.bf16.xpose.msra.mxu0 0
    %179 = vmatprep.subr.bf16.mxu0 0
    %180 = vmatpush1.bf16.xpose.msra.mxu0 0
    %181 = vmatprep.subr.bf16.mxu0 0
    %182 = vmatpush1.bf16.xpose.msra.mxu0 0
    %183 = vmatprep.subr.bf16.mxu0 0
    %184 = vmatpush1.bf16.xpose.msra.mxu0 0
    %185 = vmatprep.subr.bf16.mxu0 0
    %186 = vmatpush1.bf16.xpose.msra.mxu0 0
    %187 = vmatprep.subr.bf16.mxu0 0
    %188 = vmatpush1.bf16.xpose.msra.mxu0 0
    %189 = vmatprep.subr.bf16.mxu0 0
    %190 = vmatpush1.bf16.xpose.msra.mxu0 0
    %191 = vmatprep.subr.bf16.mxu0 0
    %192 = vmatpush1.bf16.xpose.msra.mxu0 0
    %193 = vmatprep.subr.bf16.mxu0 0
    %194 = vmatpush1.bf16.xpose.msra.mxu0 0
    %195 = vmatprep.subr.bf16.mxu0 0
    %196 = vmatpush1.bf16.xpose.msra.mxu0 0
    %197 = vmatprep.mubr.bf16.mxu0 0
    %198 = vmatmul.mubr.bf16.gmra.mrb[0].mxu0 %v160
    %v199 = vpop.f32.mrb[0].mxu0
    %v200 = vadd.f32 %v150, %v199
    %v201 = vpop.f32.mrb[0].mxu0
    %v202 = vpop.f32.mrb[0].mxu0
    %v203 = vpop.f32.mrb[0].mxu0
    %204 = vdwg.mxu0
    %205 = vrot.lane.b32.xlu0 %v155, 96
    %v206 = vpop.permute.xlu0 %205
    %v208 = vsel %vm158, %v155, 0
    %v211 = vsel %vm158, %v206, 0
    %213 = vmatprep.subr.bf16.mxu0 0
    %214 = vmatpush1.bf16.xpose.msra.mxu0 %v211
    %215 = vmatprep.subr.bf16.mxu0 0
    %216 = vmatpush1.bf16.xpose.msra.mxu0 0
    %217 = vmatprep.subr.bf16.mxu0 0
    %218 = vmatpush1.bf16.xpose.msra.mxu0 0
    %219 = vmatprep.subr.bf16.mxu0 0
    %220 = vmatpush1.bf16.xpose.msra.mxu0 0
    %221 = vmatprep.subr.bf16.mxu0 0
    %222 = vmatpush1.bf16.xpose.msra.mxu0 0
    %223 = vmatprep.subr.bf16.mxu0 0
    %224 = vmatpush1.bf16.xpose.msra.mxu0 0
    %225 = vmatprep.subr.bf16.mxu0 0
    %226 = vmatpush1.bf16.xpose.msra.mxu0 0
    %227 = vmatprep.subr.bf16.mxu0 0
    %228 = vmatpush1.bf16.xpose.msra.mxu0 0
    %229 = vmatprep.subr.bf16.mxu0 0
    %230 = vmatpush1.bf16.xpose.msra.mxu0 0
    %231 = vmatprep.subr.bf16.mxu0 0
    %232 = vmatpush1.bf16.xpose.msra.mxu0 0
    %233 = vmatprep.subr.bf16.mxu0 0
    %234 = vmatpush1.bf16.xpose.msra.mxu0 0
    %235 = vmatprep.subr.bf16.mxu0 0
    %236 = vmatpush1.bf16.xpose.msra.mxu0 0
    %237 = vmatprep.subr.bf16.mxu0 0
    %238 = vmatpush1.bf16.xpose.msra.mxu0 0
    %239 = vmatprep.subr.bf16.mxu0 0
    %240 = vmatpush1.bf16.xpose.msra.mxu0 0
    %241 = vmatprep.subr.bf16.mxu0 0
    %242 = vmatpush1.bf16.xpose.msra.mxu0 0
    %243 = vmatprep.subr.bf16.mxu0 0
    %244 = vmatpush1.bf16.xpose.msra.mxu0 0
    %245 = vmatprep.mubr.bf16.mxu0 0
    %246 = vmatmul.mubr.bf16.gmra.mrb[0].mxu0 %v208
    %v247 = vpop.f32.mrb[0].mxu0
    %v248 = vadd.f32 %v150, %v247
    %v249 = vpop.f32.mrb[0].mxu0
    %v250 = vpop.f32.mrb[0].mxu0
    %v251 = vpop.f32.mrb[0].mxu0
    %252 = vdwg.mxu0
    %vm253 = vcmask 64512
    %v254 = vsel %vm253, %v200, -inf
    %255 = vmax.xlane.f32.xlu0 %v254
    %v256 = vpop.xlane.xlu0 %255
    %v257 = vsel %vm253, %v248, -inf
    %258 = vmax.xlane.f32.xlu0 %v257
    %v259 = vpop.xlane.xlu0 %258
    %v260 = vsub.f32 %v200, %v256
    %v261 = vsub.f32 %v248, %v259
    %v262 = vmul.f32 %v260, 1.442695
    %v263 = vpow.pop %v262
    %v264 = vmul.f32 %v261, 1.442695
    %v265 = vpow.pop %v264
    %v266 = vsel %vm253, %v263, 0.0
    %267 = vadd.xlane.f32.xlu0 %v266
    %v268 = vpop.xlane.xlu0 %267
    %v269 = vsel %vm253, %v265, 0.0
    %270 = vadd.xlane.f32.xlu0 %v269
    %v271 = vpop.xlane.xlu0 %270
    %v272 = vrcp.pop %v268
    %v273 = vrcp.pop %v271
    %v274 = vmul.f32 %v263, %v272
    %v275 = vmul.f32 %v265, %v273
    %v276 = vpack.c.bf16 %v274, %v274
    %v277 = vpack.c.bf16 %v275, %v275
    %278 = vrot.lane.b32.xlu0 %v154, 64
    %v279 = vpop.permute.xlu0 %278
    %v281 = vsel %vm253, %v276, 0
    %vm283 = vcmask 1043456
    %v285 = vsel %vm283, %v279, 0
    %287 = vmatprep.subr.bf16.mxu0 0
    %288 = vmatpush1.bf16.msra.mxu0 %v285
    %289 = vmatprep.subr.bf16.mxu0 0
    %290 = vmatpush1.bf16.msra.mxu0 0
    %291 = vmatprep.subr.bf16.mxu0 0
    %292 = vmatpush1.bf16.msra.mxu0 0
    %293 = vmatprep.subr.bf16.mxu0 0
    %294 = vmatpush1.bf16.msra.mxu0 0
    %295 = vmatprep.subr.bf16.mxu0 0
    %296 = vmatpush1.bf16.msra.mxu0 0
    %297 = vmatprep.subr.bf16.mxu0 0
    %298 = vmatpush1.bf16.msra.mxu0 0
    %299 = vmatprep.subr.bf16.mxu0 0
    %300 = vmatpush1.bf16.msra.mxu0 0
    %301 = vmatprep.subr.bf16.mxu0 0
    %302 = vmatpush1.bf16.msra.mxu0 0
    %303 = vmatprep.subr.bf16.mxu0 0
    %304 = vmatpush1.bf16.msra.mxu0 0
    %305 = vmatprep.subr.bf16.mxu0 0
    %306 = vmatpush1.bf16.msra.mxu0 0
    %307 = vmatprep.subr.bf16.mxu0 0
    %308 = vmatpush1.bf16.msra.mxu0 0
    %309 = vmatprep.subr.bf16.mxu0 0
    %310 = vmatpush1.bf16.msra.mxu0 0
    %311 = vmatprep.subr.bf16.mxu0 0
    %312 = vmatpush1.bf16.msra.mxu0 0
    %313 = vmatprep.subr.bf16.mxu0 0
    %314 = vmatpush1.bf16.msra.mxu0 0
    %315 = vmatprep.subr.bf16.mxu0 0
    %316 = vmatpush1.bf16.msra.mxu0 0
    %317 = vmatprep.subr.bf16.mxu0 0
    %318 = vmatpush1.bf16.msra.mxu0 0
    %319 = vmatprep.mubr.bf16.mxu0 0
    %320 = vmatmul.mubr.bf16.gmra.mrb[0].mxu0 %v281
    %v321 = vpop.f32.mrb[0].mxu0
    %v322 = vadd.f32 0.0, %v321
    %v323 = vpop.f32.mrb[0].mxu0
    %v324 = vpop.f32.mrb[0].mxu0
    %v325 = vpop.f32.mrb[0].mxu0
    %326 = vdwg.mxu0
    %327 = vrot.lane.b32.xlu0 %v155, 64
    %v328 = vpop.permute.xlu0 %327
    %v330 = vsel %vm253, %v277, 0
    %v333 = vsel %vm283, %v328, 0
    %335 = vmatprep.subr.bf16.mxu0 0
    %336 = vmatpush1.bf16.msra.mxu0 %v333
    %337 = vmatprep.subr.bf16.mxu0 0
    %338 = vmatpush1.bf16.msra.mxu0 0
    %339 = vmatprep.subr.bf16.mxu0 0
    %340 = vmatpush1.bf16.msra.mxu0 0
    %341 = vmatprep.subr.bf16.mxu0 0
    %342 = vmatpush1.bf16.msra.mxu0 0
    %343 = vmatprep.subr.bf16.mxu0 0
    %344 = vmatpush1.bf16.msra.mxu0 0
    %345 = vmatprep.subr.bf16.mxu0 0
    %346 = vmatpush1.bf16.msra.mxu0 0
    %347 = vmatprep.subr.bf16.mxu0 0
    %348 = vmatpush1.bf16.msra.mxu0 0
    %349 = vmatprep.subr.bf16.mxu0 0
    %350 = vmatpush1.bf16.msra.mxu0 0
    %351 = vmatprep.subr.bf16.mxu0 0
    %352 = vmatpush1.bf16.msra.mxu0 0
    %353 = vmatprep.subr.bf16.mxu0 0
    %354 = vmatpush1.bf16.msra.mxu0 0
    %355 = vmatprep.subr.bf16.mxu0 0
    %356 = vmatpush1.bf16.msra.mxu0 0
    %357 = vmatprep.subr.bf16.mxu0 0
    %358 = vmatpush1.bf16.msra.mxu0 0
    %359 = vmatprep.subr.bf16.mxu0 0
    %360 = vmatpush1.bf16.msra.mxu0 0
    %361 = vmatprep.subr.bf16.mxu0 0
    %362 = vmatpush1.bf16.msra.mxu0 0
    %363 = vmatprep.subr.bf16.mxu0 0
    %364 = vmatpush1.bf16.msra.mxu0 0
    %365 = vmatprep.subr.bf16.mxu0 0
    %366 = vmatpush1.bf16.msra.mxu0 0
    %367 = vmatprep.mubr.bf16.mxu0 0
    %368 = vmatmul.mubr.bf16.gmra.mrb[0].mxu0 %v330
    %v369 = vpop.f32.mrb[0].mxu0
    %v370 = vadd.f32 0.0, %v369
    %v371 = vpop.f32.mrb[0].mxu0
    %v372 = vpop.f32.mrb[0].mxu0
    %v373 = vpop.f32.mrb[0].mxu0
    %374 = vdwg.mxu0
    %v375 = vpack.c.bf16 %v370, %v322
    %v376 = vld [vmem:[#allocation8] sm:$0xf]
    %v377 = vld [vmem:[#allocation8 + $0x4] sm:$0xf]
    %378 = vrot.lane.b32.xlu0 %v154, 112
    %v379 = vpop.permute.xlu0 %378
    %380 = vrot.lane.b32.xlu0 %v154, 80
    %v381 = vpop.permute.xlu0 %380
    %v383 = vsel %vm158, %v379, 0
    %v386 = vsel %vm158, %v381, 0
    %388 = vmatprep.subr.bf16.mxu0 0
    %389 = vmatpush1.bf16.xpose.msra.mxu0 %v386
    %390 = vmatprep.subr.bf16.mxu0 0
    %391 = vmatpush1.bf16.xpose.msra.mxu0 0
    %392 = vmatprep.subr.bf16.mxu0 0
    %393 = vmatpush1.bf16.xpose.msra.mxu0 0
    %394 = vmatprep.subr.bf16.mxu0 0
    %395 = vmatpush1.bf16.xpose.msra.mxu0 0
    %396 = vmatprep.subr.bf16.mxu0 0
    %397 = vmatpush1.bf16.xpose.msra.mxu0 0
    %398 = vmatprep.subr.bf16.mxu0 0
    %399 = vmatpush1.bf16.xpose.msra.mxu0 0
    %400 = vmatprep.subr.bf16.mxu0 0
    %401 = vmatpush1.bf16.xpose.msra.mxu0 0
    %402 = vmatprep.subr.bf16.mxu0 0
    %403 = vmatpush1.bf16.xpose.msra.mxu0 0
    %404 = vmatprep.subr.bf16.mxu0 0
    %405 = vmatpush1.bf16.xpose.msra.mxu0 0
    %406 = vmatprep.subr.bf16.mxu0 0
    %407 = vmatpush1.bf16.xpose.msra.mxu0 0
    %408 = vmatprep.subr.bf16.mxu0 0
    %409 = vmatpush1.bf16.xpose.msra.mxu0 0
    %410 = vmatprep.subr.bf16.mxu0 0
    %411 = vmatpush1.bf16.xpose.msra.mxu0 0
    %412 = vmatprep.subr.bf16.mxu0 0
    %413 = vmatpush1.bf16.xpose.msra.mxu0 0
    %414 = vmatprep.subr.bf16.mxu0 0
    %415 = vmatpush1.bf16.xpose.msra.mxu0 0
    %416 = vmatprep.subr.bf16.mxu0 0
    %417 = vmatpush1.bf16.xpose.msra.mxu0 0
    %418 = vmatprep.subr.bf16.mxu0 0
    %419 = vmatpush1.bf16.xpose.msra.mxu0 0
    %420 = vmatprep.mubr.bf16.mxu0 0
    %421 = vmatmul.mubr.bf16.gmra.mrb[0].mxu0 %v383
    %v422 = vpop.f32.mrb[0].mxu0
    %v423 = vadd.f32 %v150, %v422
    %v424 = vpop.f32.mrb[0].mxu0
    %v425 = vpop.f32.mrb[0].mxu0
    %v426 = vpop.f32.mrb[0].mxu0
    %427 = vdwg.mxu0
    %428 = vrot.lane.b32.xlu0 %v155, 112
    %v429 = vpop.permute.xlu0 %428
    %430 = vrot.lane.b32.xlu0 %v155, 80
    %v431 = vpop.permute.xlu0 %430
    %v433 = vsel %vm158, %v429, 0
    %v436 = vsel %vm158, %v431, 0
    %438 = vmatprep.subr.bf16.mxu0 0
    %439 = vmatpush1.bf16.xpose.msra.mxu0 %v436
    %440 = vmatprep.subr.bf16.mxu0 0
    %441 = vmatpush1.bf16.xpose.msra.mxu0 0
    %442 = vmatprep.subr.bf16.mxu0 0
    %443 = vmatpush1.bf16.xpose.msra.mxu0 0
    %444 = vmatprep.subr.bf16.mxu0 0
    %445 = vmatpush1.bf16.xpose.msra.mxu0 0
    %446 = vmatprep.subr.bf16.mxu0 0
    %447 = vmatpush1.bf16.xpose.msra.mxu0 0
    %448 = vmatprep.subr.bf16.mxu0 0
    %449 = vmatpush1.bf16.xpose.msra.mxu0 0
    %450 = vmatprep.subr.bf16.mxu0 0
    %451 = vmatpush1.bf16.xpose.msra.mxu0 0
    %452 = vmatprep.subr.bf16.mxu0 0
    %453 = vmatpush1.bf16.xpose.msra.mxu0 0
    %454 = vmatprep.subr.bf16.mxu0 0
    %455 = vmatpush1.bf16.xpose.msra.mxu0 0
    %456 = vmatprep.subr.bf16.mxu0 0
    %457 = vmatpush1.bf16.xpose.msra.mxu0 0
    %458 = vmatprep.subr.bf16.mxu0 0
    %459 = vmatpush1.bf16.xpose.msra.mxu0 0
    %460 = vmatprep.subr.bf16.mxu0 0
    %461 = vmatpush1.bf16.xpose.msra.mxu0 0
    %462 = vmatprep.subr.bf16.mxu0 0
    %463 = vmatpush1.bf16.xpose.msra.mxu0 0
    %464 = vmatprep.subr.bf16.mxu0 0
    %465 = vmatpush1.bf16.xpose.msra.mxu0 0
    %466 = vmatprep.subr.bf16.mxu0 0
    %467 = vmatpush1.bf16.xpose.msra.mxu0 0
    %468 = vmatprep.subr.bf16.mxu0 0
    %469 = vmatpush1.bf16.xpose.msra.mxu0 0
    %470 = vmatprep.mubr.bf16.mxu0 0
    %471 = vmatmul.mubr.bf16.gmra.mrb[0].mxu0 %v433
    %v472 = vpop.f32.mrb[0].mxu0
    %v473 = vadd.f32 %v150, %v472
    %v474 = vpop.f32.mrb[0].mxu0
    %v475 = vpop.f32.mrb[0].mxu0
    %v476 = vpop.f32.mrb[0].mxu0
    %477 = vdwg.mxu0
    %v478 = vsel %vm253, %v423, -inf
    %479 = vmax.xlane.f32.xlu0 %v478
    %v480 = vpop.xlane.xlu0 %479
    %v481 = vsel %vm253, %v473, -inf
    %482 = vmax.xlane.f32.xlu0 %v481
    %v483 = vpop.xlane.xlu0 %482
    %v484 = vsub.f32 %v423, %v480
    %v485 = vsub.f32 %v473, %v483
    %v486 = vmul.f32 %v484, 1.442695
    %v487 = vpow.pop %v486
    %v488 = vmul.f32 %v485, 1.442695
    %v489 = vpow.pop %v488
    %v490 = vsel %vm253, %v487, 0.0
    %491 = vadd.xlane.f32.xlu0 %v490
    %v492 = vpop.xlane.xlu0 %491
    %v493 = vsel %vm253, %v489, 0.0
    %494 = vadd.xlane.f32.xlu0 %v493
    %v495 = vpop.xlane.xlu0 %494
    %v496 = vrcp.pop %v492
    %v497 = vrcp.pop %v495
    %v498 = vmul.f32 %v487, %v496
    %v499 = vmul.f32 %v489, %v497
    %v500 = vpack.c.bf16 %v498, %v498
    %v501 = vpack.c.bf16 %v499, %v499
    %502 = vrot.lane.b32.xlu0 %v154, 48
    %v503 = vpop.permute.xlu0 %502
    %v505 = vsel %vm253, %v500, 0
    %v508 = vsel %vm283, %v503, 0
    %510 = vmatprep.subr.bf16.mxu0 0
    %511 = vmatpush1.bf16.msra.mxu0 %v508
    %512 = vmatprep.subr.bf16.mxu0 0
    %513 = vmatpush1.bf16.msra.mxu0 0
    %514 = vmatprep.subr.bf16.mxu0 0
    %515 = vmatpush1.bf16.msra.mxu0 0
    %516 = vmatprep.subr.bf16.mxu0 0
    %517 = vmatpush1.bf16.msra.mxu0 0
    %518 = vmatprep.subr.bf16.mxu0 0
    %519 = vmatpush1.bf16.msra.mxu0 0
    %520 = vmatprep.subr.bf16.mxu0 0
    %521 = vmatpush1.bf16.msra.mxu0 0
    %522 = vmatprep.subr.bf16.mxu0 0
    %523 = vmatpush1.bf16.msra.mxu0 0
    %524 = vmatprep.subr.bf16.mxu0 0
    %525 = vmatpush1.bf16.msra.mxu0 0
    %526 = vmatprep.subr.bf16.mxu0 0
    %527 = vmatpush1.bf16.msra.mxu0 0
    %528 = vmatprep.subr.bf16.mxu0 0
    %529 = vmatpush1.bf16.msra.mxu0 0
    %530 = vmatprep.subr.bf16.mxu0 0
    %531 = vmatpush1.bf16.msra.mxu0 0
    %532 = vmatprep.subr.bf16.mxu0 0
    %533 = vmatpush1.bf16.msra.mxu0 0
    %534 = vmatprep.subr.bf16.mxu0 0
    %535 = vmatpush1.bf16.msra.mxu0 0
    %536 = vmatprep.subr.bf16.mxu0 0
    %537 = vmatpush1.bf16.msra.mxu0 0
    %538 = vmatprep.subr.bf16.mxu0 0
    %539 = vmatpush1.bf16.msra.mxu0 0
    %540 = vmatprep.subr.bf16.mxu0 0
    %541 = vmatpush1.bf16.msra.mxu0 0
    %542 = vmatprep.mubr.bf16.mxu0 0
    %543 = vmatmul.mubr.bf16.gmra.mrb[0].mxu0 %v505
    %v544 = vpop.f32.mrb[0].mxu0
    %v545 = vadd.f32 0.0, %v544
    %v546 = vpop.f32.mrb[0].mxu0
    %v547 = vpop.f32.mrb[0].mxu0
    %v548 = vpop.f32.mrb[0].mxu0
    %549 = vdwg.mxu0
    %550 = vrot.lane.b32.xlu0 %v155, 48
    %v551 = vpop.permute.xlu0 %550
    %v553 = vsel %vm253, %v501, 0
    %v556 = vsel %vm283, %v551, 0
    %558 = vmatprep.subr.bf16.mxu0 0
    %559 = vmatpush1.bf16.msra.mxu0 %v556
    %560 = vmatprep.subr.bf16.mxu0 0
    %561 = vmatpush1.bf16.msra.mxu0 0
    %562 = vmatprep.subr.bf16.mxu0 0
    %563 = vmatpush1.bf16.msra.mxu0 0
    %564 = vmatprep.subr.bf16.mxu0 0
    %565 = vmatpush1.bf16.msra.mxu0 0
    %566 = vmatprep.subr.bf16.mxu0 0
    %567 = vmatpush1.bf16.msra.mxu0 0
    %568 = vmatprep.subr.bf16.mxu0 0
    %569 = vmatpush1.bf16.msra.mxu0 0
    %570 = vmatprep.subr.bf16.mxu0 0
    %571 = vmatpush1.bf16.msra.mxu0 0
    %572 = vmatprep.subr.bf16.mxu0 0
    %573 = vmatpush1.bf16.msra.mxu0 0
    %574 = vmatprep.subr.bf16.mxu0 0
    %575 = vmatpush1.bf16.msra.mxu0 0
    %576 = vmatprep.subr.bf16.mxu0 0
    %577 = vmatpush1.bf16.msra.mxu0 0
    %578 = vmatprep.subr.bf16.mxu0 0
    %579 = vmatpush1.bf16.msra.mxu0 0
    %580 = vmatprep.subr.bf16.mxu0 0
    %581 = vmatpush1.bf16.msra.mxu0 0
    %582 = vmatprep.subr.bf16.mxu0 0
    %583 = vmatpush1.bf16.msra.mxu0 0
    %584 = vmatprep.subr.bf16.mxu0 0
    %585 = vmatpush1.bf16.msra.mxu0 0
    %586 = vmatprep.subr.bf16.mxu0 0
    %587 = vmatpush1.bf16.msra.mxu0 0
    %588 = vmatprep.subr.bf16.mxu0 0
    %589 = vmatpush1.bf16.msra.mxu0 0
    %590 = vmatprep.mubr.bf16.mxu0 0
    %591 = vmatmul.mubr.bf16.gmra.mrb[0].mxu0 %v553
    %v592 = vpop.f32.mrb[0].mxu0
    %v593 = vadd.f32 0.0, %v592
    %v594 = vpop.f32.mrb[0].mxu0
    %v595 = vpop.f32.mrb[0].mxu0
    %v596 = vpop.f32.mrb[0].mxu0
    %597 = vdwg.mxu0
    %v598 = vpack.c.bf16 %v593, %v545
    %v599 = vld [vmem:[#allocation8 + $0x8] sm:$0xf]
    %v600 = vld [vmem:[#allocation8 + $0xc] sm:$0xf]
    %v603 = vunpack.c.l.b16 %v599
    %v604 = vunpack.c.l.b16 %v600
    %v605 = vpack.c.b16 %v604, %v603
    %v608 = vsel %vm158, %v598, 0
    %610 = vmatprep.subr.bf16.mxu0 0
    %611 = vmatpush1.bf16.msra.mxu0 %v605
    %612 = vmatprep.subr.bf16.mxu0 0
    %613 = vmatpush1.bf16.msra.mxu0 0
    %614 = vmatprep.subr.bf16.mxu0 0
    %615 = vmatpush1.bf16.msra.mxu0 0
    %616 = vmatprep.subr.bf16.mxu0 0
    %617 = vmatpush1.bf16.msra.mxu0 0
    %618 = vmatprep.subr.bf16.mxu0 0
    %619 = vmatpush1.bf16.msra.mxu0 0
    %620 = vmatprep.subr.bf16.mxu0 0
    %621 = vmatpush1.bf16.msra.mxu0 0
    %622 = vmatprep.subr.bf16.mxu0 0
    %623 = vmatpush1.bf16.msra.mxu0 0
    %624 = vmatprep.subr.bf16.mxu0 0
    %625 = vmatpush1.bf16.msra.mxu0 0
    %626 = vmatprep.subr.bf16.mxu0 0
    %627 = vmatpush1.bf16.msra.mxu0 0
    %628 = vmatprep.subr.bf16.mxu0 0
    %629 = vmatpush1.bf16.msra.mxu0 0
    %630 = vmatprep.subr.bf16.mxu0 0
    %631 = vmatpush1.bf16.msra.mxu0 0
    %632 = vmatprep.subr.bf16.mxu0 0
    %633 = vmatpush1.bf16.msra.mxu0 0
    %634 = vmatprep.subr.bf16.mxu0 0
    %635 = vmatpush1.bf16.msra.mxu0 0
    %636 = vmatprep.subr.bf16.mxu0 0
    %637 = vmatpush1.bf16.msra.mxu0 0
    %638 = vmatprep.subr.bf16.mxu0 0
    %639 = vmatpush1.bf16.msra.mxu0 0
    %640 = vmatprep.subr.bf16.mxu0 0
    %641 = vmatpush1.bf16.msra.mxu0 0
    %642 = vmatprep.mubr.bf16.mxu0 0
    %643 = vmatmul.mubr.bf16.gmra.mrb[0].mxu0 %v608
    %v644 = vpop.f32.mrb[0].mxu0
    %v645 = vadd.f32 0.0, %v644
    %v646 = vpop.f32.mrb[0].mxu0
    %v647 = vpop.f32.mrb[0].mxu0
    %v648 = vadd.f32 0.0, %v647
    %v649 = vpop.f32.mrb[0].mxu0
    %650 = vdwg.mxu0
    %v653 = vunpack.c.l.b16 %v376
    %v654 = vunpack.c.l.b16 %v377
    %v655 = vpack.c.b16 %v654, %v653
    %v658 = vsel %vm158, %v375, 0
    %660 = vmatprep.subr.bf16.mxu0 0
    %661 = vmatpush1.bf16.msra.mxu0 %v655
    %662 = vmatprep.subr.bf16.mxu0 0
    %663 = vmatpush1.bf16.msra.mxu0 0
    %664 = vmatprep.subr.bf16.mxu0 0
    %665 = vmatpush1.bf16.msra.mxu0 0
    %666 = vmatprep.subr.bf16.mxu0 0
    %667 = vmatpush1.bf16.msra.mxu0 0
    %668 = vmatprep.subr.bf16.mxu0 0
    %669 = vmatpush1.bf16.msra.mxu0 0
    %670 = vmatprep.subr.bf16.mxu0 0
    %671 = vmatpush1.bf16.msra.mxu0 0
    %672 = vmatprep.subr.bf16.mxu0 0
    %673 = vmatpush1.bf16.msra.mxu0 0
    %674 = vmatprep.subr.bf16.mxu0 0
    %675 = vmatpush1.bf16.msra.mxu0 0
    %676 = vmatprep.subr.bf16.mxu0 0
    %677 = vmatpush1.bf16.msra.mxu0 0
    %678 = vmatprep.subr.bf16.mxu0 0
    %679 = vmatpush1.bf16.msra.mxu0 0
    %680 = vmatprep.subr.bf16.mxu0 0
    %681 = vmatpush1.bf16.msra.mxu0 0
    %682 = vmatprep.subr.bf16.mxu0 0
    %683 = vmatpush1.bf16.msra.mxu0 0
    %684 = vmatprep.subr.bf16.mxu0 0
    %685 = vmatpush1.bf16.msra.mxu0 0
    %686 = vmatprep.subr.bf16.mxu0 0
    %687 = vmatpush1.bf16.msra.mxu0 0
    %688 = vmatprep.subr.bf16.mxu0 0
    %689 = vmatpush1.bf16.msra.mxu0 0
    %690 = vmatprep.subr.bf16.mxu0 0
    %691 = vmatpush1.bf16.msra.mxu0 0
    %692 = vmatprep.mubr.bf16.mxu0 0
    %693 = vmatmul.mubr.bf16.gmra.mrb[0].mxu0 %v658
    %v694 = vpop.f32.mrb[0].mxu0
    %v695 = vadd.f32 %v645, %v694
    %v696 = vpop.f32.mrb[0].mxu0
    %v697 = vpop.f32.mrb[0].mxu0
    %v698 = vadd.f32 %v648, %v697
    %v699 = vpop.f32.mrb[0].mxu0
    %700 = vdwg.mxu0
    %v701 = vld [vmem:[%s5] sm:$0x1]
    %v703 = vlaneseq
    %v704 = vshrl.u32 %v703, 7
    %v705 = vsub.s32 0, %v704
    %v706 = vrot.slane %v701, %v705
    %v708 = vadd.f32 %v695, %v706
    %v709 = vadd.f32 %v698, %v706
    %v712 = vrot.slane %v709, 7
    %vm713 = vcmask 1041409
    %v714 = vsel %vm713, %v712, %v708
    %v716 = vrot.slane %v708, 1
    %v717 = vsel %vm713, %v709, %v716
    %718 = vrot.lane.b32.xlu0 %v717, 32
    %v719 = vpop.permute.xlu0 %718
    %v721 = vrot.slane %v708, 2
    %v722 = vrot.slane %v709, 1
    %v723 = vsel %vm713, %v722, %v721
    %724 = vrot.lane.b32.xlu0 %v723, 64
    %v725 = vpop.permute.xlu0 %724
    %v727 = vrot.slane %v708, 3
    %v728 = vrot.slane %v709, 2
    %v729 = vsel %vm713, %v728, %v727
    %730 = vrot.lane.b32.xlu0 %v729, 96
    %v731 = vpop.permute.xlu0 %730
    %v733 = vrot.slane %v708, 4
    %v734 = vrot.slane %v709, 3
    %v735 = vsel %vm713, %v734, %v733
    %v737 = vrot.slane %v708, 5
    %v738 = vrot.slane %v709, 4
    %v739 = vsel %vm713, %v738, %v737
    %740 = vrot.lane.b32.xlu0 %v739, 32
    %v741 = vpop.permute.xlu0 %740
    %v743 = vrot.slane %v708, 6
    %v744 = vrot.slane %v709, 5
    %v745 = vsel %vm713, %v744, %v743
    %746 = vrot.lane.b32.xlu0 %v745, 64
    %v747 = vpop.permute.xlu0 %746
    %v749 = vrot.slane %v708, 7
    %v750 = vrot.slane %v709, 6
    %v751 = vsel %vm713, %v750, %v749
    %752 = vrot.lane.b32.xlu0 %v751, 96
    %v753 = vpop.permute.xlu0 %752
    %v755 = vsel %vm104, %v714, %v719
    %vm756 = vcmask 523264
    %v757 = vsel %vm756, %v755, %v725
    %vm758 = vcmask 785408
    %v759 = vsel %vm758, %v757, %v731
    %v760 = vsel %vm104, %v735, %v741
    %v761 = vsel %vm756, %v760, %v747
    %v762 = vsel %vm758, %v761, %v753
    %v765 = vcombine.low %v759, %v762
    %v767 = vunpack.c.l.s4 1983009808
    %v768 = vunpack.c.0.s8 %v767
    %v769 = vlaneseq
    %v770 = vshrl.u32 %v769, 7
    %v771 = vsub.s32 %v768, %v770
    %v772 = vrot.slane %v765, %v771
    %774 = vst [vmem:[#allocation10] sm:$0xf] %v772
    // Predicated region
    $region42: #{tpu_custom_call.1} parent=1 // pred_check
      _
    $region43: #{tpu_custom_call.1} parent=1 // pred_check_branch
      %776 = sbr.rel (0) target = $region45
    $region44: #{tpu_custom_call.1} parent=1 // pred_region
      %s778 = ssub.s32 64, 64
      %779 = vsyncadd [#allocation4], %s778
      %s781 = sshll.u32 [#allocation10], 4
      %s782 = int_to_ptr.vmem [resolvable:$true] %s781
      %784 = dma.vmem_to_hbm [thread:$0]  %s782, 64, %s6, [#allocation4]
    $region45: #{tpu_custom_call.1} parent=1 // pred_fallthru
      _
    // Predicated region
    $region46: #{tpu_custom_call.1} parent=1 // pred_check
      _
    $region47: #{tpu_custom_call.1} parent=1 // pred_check_branch
      %786 = sbr.rel (0) target = $region49
    $region48: #{tpu_custom_call.1} parent=1 // pred_region
      %787 = dma.done [#allocation4], 64
    $region49: #{tpu_custom_call.1} parent=1 // pred_fallthru
      _
    %788 = vsyncpa [#allocation3], 1
    %789 = vsyncpa [#allocation6], 1
    %790 = vsyncpa [#allocation9], 1
    %791 = vsyncpa [#allocation4], 1

</llo_original>
